<compile_context>
chip_gen: v7x
topology: tpu7x:2x2x1
jax: 0.10.0
libtpu: 0.0.40
codegen_flags: <defaults>
</compile_context>

<pallas_src>
import functools

import jax
import jax.numpy as jnp
from jax.experimental import pallas as pl
from jax.experimental.pallas import tpu as pltpu

_LANES = 128
_MAX_ROW_TILE = 4096       # 4096 x 128 x 4 B = 2 MiB per f32 input block
_MAX_SHARDS = 2            # v7x has 2 TensorCores; v5e/v6e get 1 shard
_PALLAS_MIN_ELEMS = 32768  # below this, plain XLA fusion is already optimal


def _cdiv(a, b):
    return -(-a // b)


def _round_up(a, b):
    return _cdiv(a, b) * b


def _packed_sublanes(dtype):
    # f32 -> 8, bf16 -> 16, int8/fp8 -> 32 (sub-32-bit dtypes pack sublanes).
    itemsize = dtype.itemsize
    return 8 * max(1, 4 // max(1, itemsize))


def _num_tensorcores():
    # v7x has 2 TensorCores per chip; v5e / v6e have 1, where a 2-way shard
    # axis would just be a serial second pass.
    try:
        kind = jax.devices()[0].device_kind.lower()
    except Exception:
        return 1
    return 2 if "v7" in kind else 1


def _bce_partial_sum_kernel(x_ref, y_ref, o_ref, *, row_tile, blocks_per_shard,
                            total_blocks, rows, hard_labels, may_overrun,
                            has_ragged_tail):
    c = pl.program_id(0)   # shard (TensorCore) index
    i = pl.program_id(1)   # block index within the shard
    block_id = c * blocks_per_shard + i

    # The output block index (c, 0, 0) is constant across the arbitrary axis,
    # so o_ref is resident: init on i == 0, accumulate directly into it.
    @pl.when(i == 0)
    def _init():
        o_ref[...] = jnp.zeros_like(o_ref)

    def compute():
        x = x_ref[...].astype(jnp.float32)
        y = y_ref[...].astype(jnp.float32)

        if hard_labels:
            # Single log for hard {0,1} labels (BalanceLoss's binary gt maps):
            # exactly equal to the two-log form when y is exactly 0 or 1.
            loss = -jnp.maximum(jnp.log(jnp.where(y > 0.5, x, 1.0 - x)), -100.0)
        else:
            # PyTorch BCE clamps each log term at -100 to avoid -inf; two logs
            # keep exact F.binary_cross_entropy semantics for soft labels.
            log_x = jnp.maximum(jnp.log(x), -100.0)
            log_1mx = jnp.maximum(jnp.log(1.0 - x), -100.0)
            loss = -(y * log_x + (1.0 - y) * log_1mx)

        def accumulate(l):
            # Fold the (row_tile, 128) tile onto the (8, 128) output with pure
            # VPU adds; no cross-lane / XLU work in the steady-state loop.
            o_ref[0] += l.reshape(row_tile // 8, 8, _LANES).sum(axis=0)

        if has_ragged_tail:
            row0 = block_id * row_tile
            needs_mask = row0 + row_tile > rows  # scalar; True only for tail

            @pl.when(needs_mask)
            def _tail():
                # OOB rows of a partial block hold garbage; log() may produce
                # NaN there, so keep this a true select (NaN does not leak).
                row_ids = row0 + jax.lax.broadcasted_iota(
                    jnp.int32, (row_tile, _LANES), 0)
                accumulate(jnp.where(row_ids < rows, loss, 0.0))

            @pl.when(jnp.logical_not(needs_mask))
            def _full():
                accumulate(loss)
        else:
            accumulate(loss)

    if may_overrun:
        # Odd split across 2 shards: the clamped duplicate block re-reads a
        # tile whose result would be discarded — skip its compute entirely.
        pl.when(block_id < total_blocks)(compute)
    else:
        compute()


def bce_loss_pallas(inp, label, *, hard_labels=False):
    """Pallas equivalent of F.binary_cross_entropy(inp, label, reduction='mean').

    hard_labels=True uses a single-log formulation that is exact when labels
    are hard {0,1}; the default keeps full soft-label BCE semantics.
    """
    assert inp.shape == label.shape
    n_elems = int(inp.size)
    if n_elems == 0:
        return jnp.float32(0.0)

    x_flat = inp.reshape(-1)
    y_flat = label.reshape(-1)

    rows = n_elems // _LANES
    main_elems = rows * _LANES

    # <=127-element ragged tail: plain jnp partial sum (no padded full copy).
    tail_sum = jnp.float32(0.0)
    if main_elems < n_elems:
        xt = x_flat[main_elems:].astype(jnp.float32)
        yt = y_flat[main_elems:].astype(jnp.float32)
        tail_sum = jnp.sum(
            -(yt * jnp.maximum(jnp.log(xt), -100.0)
              + (1.0 - yt) * jnp.maximum(jnp.log(1.0 - xt), -100.0)))

    if rows == 0:
        return tail_sum / jnp.float32(n_elems)

    x2 = x_flat[:main_elems].reshape(rows, _LANES)
    y2 = y_flat[:main_elems].reshape(rows, _LANES)

    sub = max(_packed_sublanes(inp.dtype), _packed_sublanes(label.dtype))
    row_tile = min(_MAX_ROW_TILE, _round_up(rows, sub))
    total_blocks = _cdiv(rows, row_tile)
    num_shards = max(1, min(_num_tensorcores(), _MAX_SHARDS, total_blocks))
    blocks_per_shard = _cdiv(total_blocks, num_shards)

    kernel = functools.partial(
        _bce_partial_sum_kernel,
        row_tile=row_tile,
        blocks_per_shard=blocks_per_shard,
        total_blocks=total_blocks,
        rows=rows,
        hard_labels=hard_labels,
        may_overrun=num_shards * blocks_per_shard > total_blocks,
        has_ragged_tail=rows % row_tile != 0,
    )

    def in_map(c, i):
        # Clamp so a (rare) over-running iteration of the second shard stays
        # in-bounds; its compute is skipped in the kernel.
        return (jnp.minimum(c * blocks_per_shard + i, total_blocks - 1), 0)

    def out_map(c, i):
        return (c, 0, 0)

    cost = pl.CostEstimate(
        flops=6 * main_elems,
        transcendentals=(1 if hard_labels else 2) * main_elems,
        bytes_accessed=(main_elems * (inp.dtype.itemsize + label.dtype.itemsize)
                        + num_shards * 8 * _LANES * 4),
    )

    partials = pl.pallas_call(
        kernel,
        out_shape=jax.ShapeDtypeStruct((num_shards, 8, _LANES), jnp.float32),
        grid_spec=pltpu.PrefetchScalarGridSpec(
            num_scalar_prefetch=0,
            grid=(num_shards, blocks_per_shard),
            in_specs=[
                pl.BlockSpec((row_tile, _LANES), in_map),
                pl.BlockSpec((row_tile, _LANES), in_map),
            ],
            out_specs=pl.BlockSpec((1, 8, _LANES), out_map),
        ),
        compiler_params=pltpu.CompilerParams(
            dimension_semantics=("parallel", "arbitrary"),
        ),
        cost_estimate=cost,
    )(x2, y2)

    # Single cross-lane reduction + mean, once, outside the kernel.
    return (jnp.sum(partials) + tail_sum) / jnp.float32(n_elems)


def _bce_loss_ref(inp, label):
    x = inp.astype(jnp.float32)
    y = label.astype(jnp.float32)
    return jnp.mean(-(y * jnp.maximum(jnp.log(x), -100.0)
                      + (1.0 - y) * jnp.maximum(jnp.log(1.0 - x), -100.0)))


def bce_loss(inp, label, *, hard_labels=False):
    """Dispatcher: tiny inputs stay in plain XLA (kernel launch + pipeline
    prologue dwarfs the work); larger inputs take the Pallas path."""
    if inp.size < _PALLAS_MIN_ELEMS:
        return _bce_loss_ref(inp, label)
    return bce_loss_pallas(inp, label, hard_labels=hard_labels)


if __name__ == "__main__":
    key = jax.random.PRNGKey(0)

    def make_inputs(k, shape, dtype=jnp.float32):
        k1, k2 = jax.random.split(k)
        inp = jax.nn.sigmoid(jax.random.normal(k1, shape, dtype=jnp.float32)).astype(dtype)
        label = (jax.random.uniform(k2, shape) > 0.5).astype(dtype)
        return inp, label

    k0, k1, k2, k3 = jax.random.split(key, 4)

    # 1) Small NCHW shape, as used by the segmentation-style BCE loss.
    inp, label = make_inputs(k0, (2, 4, 16, 16))
    ref = _bce_loss_ref(inp, label)
    loss = jax.block_until_ready(bce_loss_pallas(inp, label))
    assert jnp.allclose(loss, ref, rtol=1e-5, atol=1e-6), (loss, ref)

    # Hard-label single-log path must agree exactly for binary labels.
    loss_h = jax.block_until_ready(bce_loss_pallas(inp, label, hard_labels=True))
    assert jnp.allclose(loss_h, ref, rtol=1e-5, atol=1e-6), (loss_h, ref)

    # The dispatcher path (plain jnp for this tiny size) must agree too.
    loss_d = jax.block_until_ready(bce_loss(inp, label))
    assert jnp.allclose(loss_d, ref, rtol=1e-5, atol=1e-6), (loss_d, ref)

    # 2) Ragged element count (exercises the jnp tail path + the in-kernel
    #    partial-block row mask; 1938 elements -> 15 full lanes + 18 tail).
    inp2, label2 = make_inputs(k1, (2, 3, 17, 19))
    loss2 = jax.block_until_ready(bce_loss_pallas(inp2, label2))
    ref2 = _bce_loss_ref(inp2, label2)
    assert jnp.allclose(loss2, ref2, rtol=1e-5, atol=1e-6), (loss2, ref2)

    # 3) Native bf16 inputs (exercises packed-sublane row_tile rounding and
    #    native-dtype reads).
    inp3, label3 = make_inputs(k2, (4, 4, 128, 128), dtype=jnp.bfloat16)
    loss3 = jax.block_until_ready(bce_loss_pallas(inp3, label3))
    ref3 = _bce_loss_ref(inp3, label3)
    assert jnp.allclose(loss3, ref3, rtol=2e-5, atol=1e-5), (loss3, ref3)

    # 4) Multi-block path: 9216 rows -> 3 blocks of 4096 rows with a masked
    #    partial tail block (and, on v7x, a 2-shard split with one skipped
    #    over-run block).
    inp4, label4 = make_inputs(k3, (2, 1, 768, 768))
    loss4 = jax.block_until_ready(bce_loss_pallas(inp4, label4))
    ref4 = _bce_loss_ref(inp4, label4)
    assert jnp.allclose(loss4, ref4, rtol=1e-4, atol=1e-6), (loss4, ref4)

    print("KERNEL_OK")
</pallas_src>

<mosaic_0001>
module attributes {stable_mosaic.version = 11 : i64} {
  func.func @_bce_partial_sum_kernel(%arg0: i32, %arg1: i32, %arg2: memref<16x128xf32, #tpu.memory_space<vmem>>, %arg3: memref<16x128xf32, #tpu.memory_space<vmem>>, %arg4: memref<1x8x128xf32, #tpu.memory_space<vmem>>) attributes {dimension_semantics = [#tpu.dimension_semantics<parallel>, #tpu.dimension_semantics<arbitrary>], iteration_bounds = array<i64: 1, 1>, scalar_prefetch = 0 : i64, scratch_operands = 0 : i64, tpu.core_type = #tpu.core_type<tc>, window_params = [{transform_indices = @transform_0, window_bounds = array<i64: 16, 128>}, {transform_indices = @transform_1, window_bounds = array<i64: 16, 128>}, {transform_indices = @transform_2, window_bounds = array<i64: 1, 8, 128>}]} {
    %c0_i32 = arith.constant 0 : i32
    %0 = arith.cmpi eq, %arg1, %c0_i32 : i32
    %1 = arith.extui %0 : i1 to i32
    %c0_i32_0 = arith.constant 0 : i32
    %2 = arith.cmpi ne, %1, %c0_i32_0 : i32
    scf.if %2 {
      %cst_15 = arith.constant 0.000000e+00 : f32
      %28 = vector.broadcast %cst_15 : f32 to vector<1x8x128xf32>
      %c0_16 = arith.constant 0 : index
      %c0_17 = arith.constant 0 : index
      %c0_18 = arith.constant 0 : index
      %29 = vector.load %arg4[%c0_16, %c0_17, %c0_18] : memref<1x8x128xf32, #tpu.memory_space<vmem>>, vector<1x8x128xf32>
      tpu.vector_store %arg4[%c0_16, %c0_17, %c0_18], %28 {strides = array<i32>} : memref<1x8x128xf32, #tpu.memory_space<vmem>>, vector<1x8x128xf32>,
    } else {
    }
    %c0 = arith.constant 0 : index
    %c0_1 = arith.constant 0 : index
    %3 = vector.load %arg2[%c0, %c0_1] : memref<16x128xf32, #tpu.memory_space<vmem>>, vector<16x128xf32>
    %c0_2 = arith.constant 0 : index
    %c0_3 = arith.constant 0 : index
    %4 = vector.load %arg3[%c0_2, %c0_3] : memref<16x128xf32, #tpu.memory_space<vmem>>, vector<16x128xf32>
    %5 = math.log %3 : vector<16x128xf32>
    %cst = arith.constant -1.000000e+02 : f32
    %6 = vector.broadcast %cst : f32 to vector<16x128xf32>
    %7 = arith.maximumf %5, %6 : vector<16x128xf32>
    %cst_4 = arith.constant 1.000000e+00 : f32
    %8 = vector.broadcast %cst_4 : f32 to vector<16x128xf32>
    %9 = arith.subf %8, %3 : vector<16x128xf32>
    %10 = math.log %9 : vector<16x128xf32>
    %cst_5 = arith.constant -1.000000e+02 : f32
    %11 = vector.broadcast %cst_5 : f32 to vector<16x128xf32>
    %12 = arith.maximumf %10, %11 : vector<16x128xf32>
    %13 = arith.mulf %4, %7 : vector<16x128xf32>
    %cst_6 = arith.constant 1.000000e+00 : f32
    %14 = vector.broadcast %cst_6 : f32 to vector<16x128xf32>
    %15 = arith.subf %14, %4 : vector<16x128xf32>
    %16 = arith.mulf %15, %12 : vector<16x128xf32>
    %17 = arith.addf %13, %16 : vector<16x128xf32>
    %cst_7 = arith.constant 0.000000e+00 : f32
    %18 = vector.broadcast %cst_7 : f32 to vector<16x128xf32>
    %19 = arith.subf %18, %17 : vector<16x128xf32>
    %c0_8 = arith.constant 0 : index
    %c0_9 = arith.constant 0 : index
    %c0_10 = arith.constant 0 : index
    %20 = vector.load %arg4[%c0_8, %c0_9, %c0_10] : memref<1x8x128xf32, #tpu.memory_space<vmem>>, vector<1x8x128xf32>
    %21 = vector.shape_cast %20 : vector<1x8x128xf32> to vector<8x128xf32>
    %22 = vector.shape_cast %19 : vector<16x128xf32> to vector<2x8x128xf32>
    %cst_11 = arith.constant dense<0.000000e+00> : vector<8x128xf32>
    %23 = vector.multi_reduction <add>, %22, %cst_11 [0] : vector<2x8x128xf32> to vector<8x128xf32>
    %24 = arith.addf %21, %23 : vector<8x128xf32>
    %c0_12 = arith.constant 0 : index
    %c0_13 = arith.constant 0 : index
    %c0_14 = arith.constant 0 : index
    %25 = vector.load %arg4[%c0_12, %c0_13, %c0_14] : memref<1x8x128xf32, #tpu.memory_space<vmem>>, vector<1x8x128xf32>
    %26 = vector.shape_cast %25 : vector<1x8x128xf32> to vector<8x128xf32>
    %27 = vector.shape_cast %24 : vector<8x128xf32> to vector<1x8x128xf32>
    tpu.vector_store %arg4[%c0_12, %c0_13, %c0_14], %27 {strides = array<i32>} : memref<1x8x128xf32, #tpu.memory_space<vmem>>, vector<1x8x128xf32>,
    return
  }
  func.func @transform_0(%arg0: i32, %arg1: i32) -> (i32, i32) {
    %c1_i32 = arith.constant 1 : i32
    %0 = arith.muli %arg0, %c1_i32 : i32
    %1 = arith.addi %0, %arg1 : i32
    %c0_i32 = arith.constant 0 : i32
    %2 = arith.minsi %1, %c0_i32 : i32
    %c0_i32_0 = arith.constant 0 : i32
    %c0_i32_1 = arith.constant 0 : i32
    return %2, %c0_i32_0 : i32, i32
  }
  func.func @transform_1(%arg0: i32, %arg1: i32) -> (i32, i32) {
    %c1_i32 = arith.constant 1 : i32
    %0 = arith.muli %arg0, %c1_i32 : i32
    %1 = arith.addi %0, %arg1 : i32
    %c0_i32 = arith.constant 0 : i32
    %2 = arith.minsi %1, %c0_i32 : i32
    %c0_i32_0 = arith.constant 0 : i32
    %c0_i32_1 = arith.constant 0 : i32
    return %2, %c0_i32_0 : i32, i32
  }
  func.func @transform_2(%arg0: i32, %arg1: i32) -> (i32, i32, i32) {
    %c0_i32 = arith.constant 0 : i32
    %c0_i32_0 = arith.constant 0 : i32
    %c0_i32_1 = arith.constant 0 : i32
    return %arg0, %c0_i32, %c0_i32_0 : i32, i32, i32
  }
}

</mosaic_0001>

<llo_original>
// kernel: tpu_custom_call.1
$region0: #{tpu_custom_call.1}
  #allocation0 [shape = 'u32[]', space=smem, size = 0x4, offset = 0x4, fixed_abs, tag = 'smem constant byte address 0x4 - core index']
  #allocation1 [shape = 'u32[144,128]{1,0:T(1,128)}', space=vmem, size = 0x12000, scoped, tag = 'internal scratch']
  %s0 = inlined_call_operand.hbm [shape: f32[16,128], index: 0, kind: input, shape index: {}]
  %s1 = inlined_call_operand.hbm [shape: f32[16,128], index: 1, kind: input, shape index: {}]
  %s2 = inlined_call_operand.hbm [shape: f32[1,8,128], index: 2, kind: output, shape index: {}]
  %s3 = sld [smem:[#allocation0]]
  $region30: #{tpu_custom_call.1} parent=0
    _
  %s5 = ssub.s32 1, %s3
  %s6 = scalar_select 0, %s5, %s3
  $region1: #{tpu_custom_call.1} parent=0
    #allocation2 [shape = 'u8[8192]{0}', space=vmem, size = 0x2000, scoped, tag = 'input window, operand 0, single buffered']
    #allocation3 [shape = 's32[1]{0}', space=sflag, size = 0x4, scoped, tag = 'scoped memory for tpu_custom_call.1']
    #allocation4 [shape = 's32[1]{0}', space=sflag, size = 0x4, scoped, tag = 'scoped memory for tpu_custom_call.1']
    #allocation5 [shape = 'u8[8192]{0}', space=vmem, size = 0x2000, scoped, tag = 'input window, operand 1, single buffered']
    #allocation6 [shape = 's32[1]{0}', space=sflag, size = 0x4, scoped, tag = 'scoped memory for tpu_custom_call.1']
    #allocation7 [shape = 'u8[4096]{0}', space=vmem, size = 0x1000, scoped, tag = 'output window, operand 0, single buffered']
    %7 = vsyncpa [#allocation3], 0
    %8 = vsyncpa [#allocation6], 0
    %9 = vsyncpa [#allocation4], 0
    // Predicated region
    $region2: #{tpu_custom_call.1} parent=1 // pred_check
      _
    $region3: #{tpu_custom_call.1} parent=1 // pred_check_branch
      %11 = sbr.rel (0) target = $region5
    $region4: #{tpu_custom_call.1} parent=1 // pred_region
      %s12 = sadd.s32 0, 0
      %p13 = scmp.lt.s32.totalorder %s12, 0
      %s14 = scalar_select %p13, %s12, 0
      %s15 = smul.u32 2, %s14
      %s17 = ssub.s32 256, 256
      %18 = vsyncadd [#allocation3], %s17
      %s19 = smul.addr %s15, 128
      %s20 = scalar_lea.hbm %s0, %s19
      %s21 = sshll.u32 [#allocation2], 4
      %s22 = int_to_ptr.vmem [resolvable:$true] %s21
      %27 = dma.hbm_to_vmem [thread:$0]  %s20, 256, %s22, [#allocation3], 128, 128, 8
    $region5: #{tpu_custom_call.1} parent=1 // pred_fallthru
      _
    // Predicated region
    $region6: #{tpu_custom_call.1} parent=1 // pred_check
      _
    $region7: #{tpu_custom_call.1} parent=1 // pred_check_branch
      %29 = sbr.rel (0) target = $region9
    $region8: #{tpu_custom_call.1} parent=1 // pred_region
      %s30 = sadd.s32 0, 0
      %p31 = scmp.lt.s32.totalorder %s30, 0
      %s32 = scalar_select %p31, %s30, 0
      %s33 = smul.u32 2, %s32
      %s35 = ssub.s32 256, 256
      %36 = vsyncadd [#allocation6], %s35
      %s37 = smul.addr %s33, 128
      %s38 = scalar_lea.hbm %s1, %s37
      %s39 = sshll.u32 [#allocation5], 4
      %s40 = int_to_ptr.vmem [resolvable:$true] %s39
      %45 = dma.hbm_to_vmem [thread:$0]  %s38, 256, %s40, [#allocation6], 128, 128, 8
    $region9: #{tpu_custom_call.1} parent=1 // pred_fallthru
      _
    // Predicated region
    $region10: #{tpu_custom_call.1} parent=1 // pred_check
      _
    $region11: #{tpu_custom_call.1} parent=1 // pred_check_branch
      %47 = sbr.rel (0) target = $region13
    $region12: #{tpu_custom_call.1} parent=1 // pred_region
      %48 = dma.done [#allocation3], 256
    $region13: #{tpu_custom_call.1} parent=1 // pred_fallthru
      _
    // Predicated region
    $region14: #{tpu_custom_call.1} parent=1 // pred_check
      _
    $region15: #{tpu_custom_call.1} parent=1 // pred_check_branch
      %50 = sbr.rel (0) target = $region17
    $region16: #{tpu_custom_call.1} parent=1 // pred_region
      %51 = dma.done [#allocation6], 256
    $region17: #{tpu_custom_call.1} parent=1 // pred_fallthru
      _
    %s52 = sadd.s32 0, 0
    %p53 = scmp.lt.s32.totalorder %s52, 0
    %s54 = scalar_select %p53, %s52, 0
    %s55 = smul.u32 2, %s54
    %s56 = sadd.s32 0, 0
    %p57 = scmp.lt.s32.totalorder %s56, 0
    %s58 = scalar_select %p57, %s56, 0
    %s59 = smul.u32 2, %s58
    %p60 = scmp.eq.s32.totalorder 0, 0
    // Predicated region
    $region18: #{tpu_custom_call.1} parent=1 // pred_check
      %p61 = pneg %p60
    $region19: #{tpu_custom_call.1} parent=1 // pred_check_branch
      %63 = sbr.rel (%p61) target = $region21
    $region20: #{tpu_custom_call.1} parent=1 // pred_region
      %64 = vst [vmem:[#allocation7] sm:$0xff] 0.0
    $region21: #{tpu_custom_call.1} parent=1 // pred_fallthru
      _
    %v65 = vld [vmem:[#allocation2] sm:$0xff]
    %v66 = vld [vmem:[#allocation2 + $0x8] sm:$0xff]
    %v67 = vld [vmem:[#allocation5] sm:$0xff]
    %v68 = vld [vmem:[#allocation5 + $0x8] sm:$0xff]
    %v69 = vlog2.pop %v65
    %v70 = vmul.f32 %v69, 0.6931472
    %v71 = vlog2.pop %v66
    %v72 = vmul.f32 %v71, 0.6931472
    %v73 = vmax.f32 %v70, -100.0
    %v74 = vmax.f32 %v72, -100.0
    %v75 = vsub.f32 1.0, %v65
    %v76 = vsub.f32 1.0, %v66
    %v77 = vlog2.pop %v75
    %v78 = vmul.f32 %v77, 0.6931472
    %v79 = vlog2.pop %v76
    %v80 = vmul.f32 %v79, 0.6931472
    %v81 = vmax.f32 %v78, -100.0
    %v82 = vmax.f32 %v80, -100.0
    %v83 = vmul.f32 %v67, %v73
    %v84 = vmul.f32 %v68, %v74
    %v85 = vsub.f32 1.0, %v67
    %v86 = vsub.f32 1.0, %v68
    %v87 = vmul.f32 %v85, %v81
    %v88 = vmul.f32 %v86, %v82
    %v89 = vadd.f32 %v83, %v87
    %v90 = vadd.f32 %v84, %v88
    %v91 = vsub.f32 0.0, %v89
    %v92 = vsub.f32 0.0, %v90
    %v93 = vld [vmem:[#allocation7] sm:$0xff]
    %v94 = vadd.f32 %v91, %v92
    %v95 = vadd.f32 %v93, %v94
    %96 = vst [vmem:[#allocation7] sm:$0xff] %v95
    // Predicated region
    $region22: #{tpu_custom_call.1} parent=1 // pred_check
      _
    $region23: #{tpu_custom_call.1} parent=1 // pred_check_branch
      %98 = sbr.rel (0) target = $region25
    $region24: #{tpu_custom_call.1} parent=1 // pred_region
      %s100 = ssub.s32 128, 128
      %101 = vsyncadd [#allocation4], %s100
      %s103 = sshll.u32 [#allocation7], 4
      %s104 = int_to_ptr.vmem [resolvable:$true] %s103
      %106 = dma.vmem_to_hbm [thread:$0]  %s104, 128, %s2, [#allocation4]
    $region25: #{tpu_custom_call.1} parent=1 // pred_fallthru
      _
    // Predicated region
    $region26: #{tpu_custom_call.1} parent=1 // pred_check
      _
    $region27: #{tpu_custom_call.1} parent=1 // pred_check_branch
      %108 = sbr.rel (0) target = $region29
    $region28: #{tpu_custom_call.1} parent=1 // pred_region
      %109 = dma.done [#allocation4], 128
    $region29: #{tpu_custom_call.1} parent=1 // pred_fallthru
      _
    %110 = vsyncpa [#allocation3], 1
    %111 = vsyncpa [#allocation6], 1
    %112 = vsyncpa [#allocation4], 1

</llo_original>
